<compile_context>
chip_gen: v6e
topology: v6e:2x2x1
jax: 0.10.0
libtpu: 0.0.40
codegen_flags: <defaults>
</compile_context>

<pallas_src>
import functools

import jax
import jax.numpy as jnp
from jax.experimental import pallas as pl
from jax.experimental.pallas import tpu as pltpu


def _dtfd_tier2_kernel(h_ref, wcat_ref, bcat_ref, ww_ref, bw_ref, bc_ref,
                       out_ref, *, D, N, BT):
    """One grid step = BT pseudo-bags of N instances each.

    h_ref    : [BT*N, L]  instance features for one block of bags
    wcat_ref : [L, 2D+2]  fused weights (cols [0:D]=V, [D:2D]=U, [2D:2D+2]=classifier)
    bcat_ref : [1, 2D+2]  fused biases  (bv | bu | 0, 0)
    ww_ref   : [1, D]     attention_weights Linear(D, 1) weight row
    bw_ref   : [1, 1]     attention_weights bias
    bc_ref   : [1, 2]     classifier bias (added once, AFTER the weighted sum)
    out_ref  : [BT, 2]
    """
    h = h_ref[...]                                                   # [M, L]

    # Single fused MXU pass over the whole bag block.
    fused = (jnp.dot(h, wcat_ref[...], preferred_element_type=jnp.float32)
             + bcat_ref[...])                                        # [M, 2D+2]

    a_v = jnp.tanh(fused[:, :D])                                     # [M, D]
    a_u = jax.nn.sigmoid(fused[:, D:2 * D])                          # [M, D]
    z = fused[:, 2 * D:2 * D + 2]                                    # [M, 2] per-instance logits

    gated = a_v * a_u                                                # [M, D]

    # Attention logits: broadcast-multiply + lane reduction (no width-1 matmul).
    a = jnp.sum(gated * ww_ref[...], axis=1, keepdims=True) + bw_ref[...]  # [M, 1]

    # Segmented softmax over the N instances of each bag (== torch softmax(A.T, dim=1)).
    a3 = a.reshape(BT, N, 1)
    a_max = jnp.max(a3, axis=1, keepdims=True)                       # [BT, 1, 1]
    e = jnp.exp(a3 - a_max)
    s = jnp.sum(e, axis=1, keepdims=True)                            # [BT, 1, 1]
    inv = pl.reciprocal(s, approx=True)                              # EUP slot
    inv = inv * (2.0 - s * inv)              # one Newton step -> f32-accurate
    a_norm = e * inv                                                 # [BT, N, 1]

    # Y = softmax(A).T @ H @ Wc + bc  ==  sum_n a_norm[n] * z[n] + bc
    z3 = z.reshape(BT, N, 2)
    out_ref[...] = jnp.sum(a_norm * z3, axis=1) + bc_ref[...]        # [BT, 2]


def fuse_dtfd_tier2_params(Wv, bv, Wu, bu, Wc, bc):
    """Build the fused weight/bias ONCE at parameter-init time (not per forward).

    All weights are stored pre-transposed so the kernel computes x @ W.
      Wcat[:, 0:D]     = Wv      bcat[:, 0:D]     = bv
      Wcat[:, D:2D]    = Wu      bcat[:, D:2D]    = bu
      Wcat[:, 2D:2D+2] = Wc      bcat[:, 2D:2D+2] = 0   (bc added post-sum)
    """
    L, D = Wv.shape
    # The fused layout assumes the classifier is Linear(L*K, 2) with K == 1,
    # exactly as in the torch module (K is fixed to 1 there).
    assert Wc.shape == (L, 2), "fused layout requires classifier Linear(L, 2) (K == 1)"
    Wcat = jnp.concatenate([Wv, Wu, Wc], axis=1).astype(jnp.float32)          # [L, 2D+2]
    bcat = jnp.concatenate([jnp.asarray(bv, jnp.float32).reshape(1, D),
                            jnp.asarray(bu, jnp.float32).reshape(1, D),
                            jnp.zeros((1, 2), jnp.float32)], axis=1)          # [1, 2D+2]
    return Wcat, bcat


def _choose_bag_block(B, N, L):
    """Largest bag block whose f32 H tile stays comfortably within VMEM."""
    budget = 8 << 20                         # ~8 MiB H block (x2 with double buffering)
    bytes_per_bag = N * L * 4
    if B * bytes_per_bag <= budget:
        return B                             # everything in one grid step
    cands = [bt for bt in range(1, B + 1)
             if B % bt == 0 and bt * bytes_per_bag <= budget]
    return max(cands) if cands else 1


def dtfd_tier2(H, Wcat, bcat, Ww, bw, bc):
    """H: [N, L] (single bag, matches torch forward) or [B, N, L] (batched)."""
    single = (H.ndim == 2)
    if single:
        H = H[None]
    B, N, L = H.shape
    C = Wcat.shape[1]
    D = (C - 2) // 2

    BT = _choose_bag_block(B, N, L)
    G = B // BT
    M = BT * N
    if G > 1:
        # Blocks that don't cover the full row extent must stay sublane-aligned.
        assert M % 8 == 0, "BT*N must be a multiple of 8 when splitting the bag axis"

    # Free reshape (no padding, no extra HBM round-trip of H).
    H2 = H.reshape(B * N, L).astype(jnp.float32)

    kernel = functools.partial(_dtfd_tier2_kernel, D=D, N=N, BT=BT)
    const = lambda i: (0, 0)                 # weights stay resident across grid steps

    cost = pl.CostEstimate(
        flops=2 * B * N * L * C + 6 * B * N * D,
        transcendentals=B * N * (2 * D + 1),
        bytes_accessed=4 * (B * N * L + L * C + C + D + 3 + B * 2),
    )

    out = pl.pallas_call(
        kernel,
        out_shape=jax.ShapeDtypeStruct((G, BT, 2), jnp.float32),
        grid=(G,),
        in_specs=[
            pl.BlockSpec((M, L), lambda i: (i, 0)),    # one block of bags per step
            pl.BlockSpec((L, C), const),               # fused W (unpadded [L, 2D+2])
            pl.BlockSpec((1, C), const),               # fused bias (bv | bu | 0)
            pl.BlockSpec((1, D), const),               # Ww
            pl.BlockSpec((1, 1), const),               # bw
            pl.BlockSpec((1, 2), const),               # bc
        ],
        out_specs=pl.BlockSpec((None, BT, 2), lambda i: (i, 0, 0)),
        compiler_params=pltpu.CompilerParams(
            dimension_semantics=("arbitrary",)),       # tiny per-step work: no megacore split
        cost_estimate=cost,
    )(H2, Wcat, bcat, Ww, bw, bc)

    out = out.reshape(B, 1, 2)
    return out[0] if single else out           # [1, 2] single / [B, 1, 2] batched


def _reference(H, Wv, bv, Wu, bu, Ww, bw, Wc, bc):
    a_v = jnp.tanh(H @ Wv + bv)
    a_u = jax.nn.sigmoid(H @ Wu + bu)
    a = jnp.sum((a_v * a_u) * Ww, axis=1, keepdims=True) + bw   # [N, 1]
    a = jax.nn.softmax(a, axis=0)
    m = a.T @ H                                                 # [1, L]
    return m @ Wc + bc                                          # [1, 2]


if __name__ == "__main__":
    N, L, D, K = 8, 1000, 32, 1   # PE=False => L=1000; cD=32; K fixed to 1
    B = 4                         # pseudo-bags processed in one batched call

    key = jax.random.PRNGKey(0)
    kH, kWv, kbv, kWu, kbu, kWw, kbw, kWc, kbc = jax.random.split(key, 9)

    # Weights are stored pre-transposed (in-dim first) so layers compute x @ W.
    H  = jax.random.normal(kH,  (B, N, L), dtype=jnp.float32)
    Wv = jax.random.normal(kWv, (L, D), dtype=jnp.float32) * 0.02
    bv = jax.random.normal(kbv, (1, D), dtype=jnp.float32) * 0.02
    Wu = jax.random.normal(kWu, (L, D), dtype=jnp.float32) * 0.02
    bu = jax.random.normal(kbu, (1, D), dtype=jnp.float32) * 0.02
    Ww = jax.random.normal(kWw, (1, D), dtype=jnp.float32) * 0.02  # Linear(D,1) weight row
    bw = jax.random.normal(kbw, (1, 1), dtype=jnp.float32) * 0.02
    Wc = jax.random.normal(kWc, (L * K, 2), dtype=jnp.float32) * 0.02
    bc = jax.random.normal(kbc, (1, 2), dtype=jnp.float32) * 0.02

    # Weight fusion done once (init-time), not per forward call.
    Wcat, bcat = fuse_dtfd_tier2_params(Wv, bv, Wu, bu, Wc, bc)

    # Batched path: one pallas_call, all bags in a single grid step.
    out_b = jax.block_until_ready(dtfd_tier2(H, Wcat, bcat, Ww, bw, bc))
    assert out_b.shape == (B, 1, 2)
    ref_b = jnp.stack([_reference(H[b], Wv, bv, Wu, bu, Ww, bw, Wc, bc)
                       for b in range(B)])
    assert jnp.allclose(out_b, ref_b, atol=1e-4, rtol=1e-4), (out_b, ref_b)

    # Single-bag path (matches the torch module's forward signature).
    out_s = jax.block_until_ready(dtfd_tier2(H[0], Wcat, bcat, Ww, bw, bc))
    assert out_s.shape == (1, 2)
    assert jnp.allclose(out_s, ref_b[0], atol=1e-4, rtol=1e-4), (out_s, ref_b[0])

    print("KERNEL_OK")
</pallas_src>

<mosaic_0001>
module attributes {stable_mosaic.version = 11 : i64} {
  func.func @_dtfd_tier2_kernel(%arg0: i32, %arg1: memref<32x1000xf32, #tpu.memory_space<vmem>>, %arg2: memref<1000x66xf32, #tpu.memory_space<vmem>>, %arg3: memref<1x66xf32, #tpu.memory_space<vmem>>, %arg4: memref<1x32xf32, #tpu.memory_space<vmem>>, %arg5: memref<1x1xf32, #tpu.memory_space<vmem>>, %arg6: memref<1x2xf32, #tpu.memory_space<vmem>>, %arg7: memref<1x4x2xf32, #tpu.memory_space<vmem>>) attributes {dimension_semantics = [#tpu.dimension_semantics<arbitrary>], iteration_bounds = array<i64: 1>, scalar_prefetch = 0 : i64, scratch_operands = 0 : i64, tpu.core_type = #tpu.core_type<tc>, window_params = [{transform_indices = @transform_0, window_bounds = array<i64: 32, 1000>}, {pipeline_mode = #tpu.pipeline_mode<synchronous>, transform_indices = @transform_1, window_bounds = array<i64: 1000, 66>}, {pipeline_mode = #tpu.pipeline_mode<synchronous>, transform_indices = @transform_2, window_bounds = array<i64: 1, 66>}, {pipeline_mode = #tpu.pipeline_mode<synchronous>, transform_indices = @transform_3, window_bounds = array<i64: 1, 32>}, {pipeline_mode = #tpu.pipeline_mode<synchronous>, transform_indices = @transform_4, window_bounds = array<i64: 1, 1>}, {pipeline_mode = #tpu.pipeline_mode<synchronous>, transform_indices = @transform_5, window_bounds = array<i64: 1, 2>}, {transform_indices = @transform_6, window_bounds = array<i64: 1, 4, 2>}]} {
    %c0 = arith.constant 0 : index
    %c0_0 = arith.constant 0 : index
    %0 = vector.load %arg1[%c0, %c0_0] : memref<32x1000xf32, #tpu.memory_space<vmem>>, vector<32x1000xf32>
    %c0_1 = arith.constant 0 : index
    %c0_2 = arith.constant 0 : index
    %1 = vector.load %arg2[%c0_1, %c0_2] : memref<1000x66xf32, #tpu.memory_space<vmem>>, vector<1000x66xf32>
    %cst = arith.constant dense<0.000000e+00> : vector<32x66xf32>
    %2 = tpu.matmul %0, %1, %cst {dimension_numbers = #tpu.dot_dimension_numbers<[1], [0], [0], [1], [0, 0, 1, 1], [], []>} : vector<32x1000xf32>, vector<1000x66xf32>, vector<32x66xf32> -> vector<32x66xf32>
    %c0_3 = arith.constant 0 : index
    %c0_4 = arith.constant 0 : index
    %3 = vector.load %arg3[%c0_3, %c0_4] : memref<1x66xf32, #tpu.memory_space<vmem>>, vector<1x66xf32>
    %4 = vector.broadcast %3 : vector<1x66xf32> to vector<32x66xf32>
    %5 = arith.addf %2, %4 : vector<32x66xf32>
    %6 = vector.extract_strided_slice %5 {offsets = [0, 0], sizes = [32, 32], strides = [1, 1]} : vector<32x66xf32> to vector<32x32xf32>
    %7 = math.tanh %6 : vector<32x32xf32>
    %8 = vector.extract_strided_slice %5 {offsets = [0, 32], sizes = [32, 32], strides = [1, 1]} : vector<32x66xf32> to vector<32x32xf32>
    %9 = arith.negf %8 : vector<32x32xf32>
    %10 = math.exp %9 : vector<32x32xf32>
    %cst_5 = arith.constant 1.000000e+00 : f32
    %11 = vector.broadcast %cst_5 : f32 to vector<32x32xf32>
    %12 = arith.addf %11, %10 : vector<32x32xf32>
    %13 = arith.divf %11, %12 : vector<32x32xf32>
    %14 = vector.extract_strided_slice %5 {offsets = [0, 64], sizes = [32, 2], strides = [1, 1]} : vector<32x66xf32> to vector<32x2xf32>
    %15 = arith.mulf %7, %13 : vector<32x32xf32>
    %c0_6 = arith.constant 0 : index
    %c0_7 = arith.constant 0 : index
    %16 = vector.load %arg4[%c0_6, %c0_7] : memref<1x32xf32, #tpu.memory_space<vmem>>, vector<1x32xf32>
    %17 = vector.broadcast %16 : vector<1x32xf32> to vector<32x32xf32>
    %18 = arith.mulf %15, %17 : vector<32x32xf32>
    %cst_8 = arith.constant dense<0.000000e+00> : vector<32xf32>
    %19 = vector.multi_reduction <add>, %18, %cst_8 [1] : vector<32x32xf32> to vector<32xf32>
    %20 = vector.shape_cast %19 : vector<32xf32> to vector<32x1xf32>
    %c0_9 = arith.constant 0 : index
    %c0_10 = arith.constant 0 : index
    %21 = vector.load %arg5[%c0_9, %c0_10] : memref<1x1xf32, #tpu.memory_space<vmem>>, vector<1x1xf32>
    %22 = vector.broadcast %21 : vector<1x1xf32> to vector<32x1xf32>
    %23 = arith.addf %20, %22 : vector<32x1xf32>
    %24 = vector.shape_cast %23 : vector<32x1xf32> to vector<4x8x1xf32>
    %cst_11 = arith.constant dense<0xFF800000> : vector<4x1xf32>
    %25 = vector.multi_reduction <maximumf>, %24, %cst_11 [1] : vector<4x8x1xf32> to vector<4x1xf32>
    %26 = vector.shape_cast %25 : vector<4x1xf32> to vector<4x1x1xf32>
    %27 = vector.broadcast %26 : vector<4x1x1xf32> to vector<4x8x1xf32>
    %28 = arith.subf %24, %27 : vector<4x8x1xf32>
    %29 = math.exp %28 : vector<4x8x1xf32>
    %cst_12 = arith.constant dense<0.000000e+00> : vector<4x1xf32>
    %30 = vector.multi_reduction <add>, %29, %cst_12 [1] : vector<4x8x1xf32> to vector<4x1xf32>
    %31 = vector.shape_cast %30 : vector<4x1xf32> to vector<4x1x1xf32>
    %32 = tpu.reciprocal %31 {approx = true} : vector<4x1x1xf32> -> vector<4x1x1xf32>
    %33 = arith.mulf %31, %32 : vector<4x1x1xf32>
    %cst_13 = arith.constant 2.000000e+00 : f32
    %34 = vector.broadcast %cst_13 : f32 to vector<4x1x1xf32>
    %35 = arith.subf %34, %33 : vector<4x1x1xf32>
    %36 = arith.mulf %32, %35 : vector<4x1x1xf32>
    %37 = vector.broadcast %36 : vector<4x1x1xf32> to vector<4x8x1xf32>
    %38 = arith.mulf %29, %37 : vector<4x8x1xf32>
    %39 = vector.shape_cast %14 : vector<32x2xf32> to vector<4x8x2xf32>
    %40 = vector.broadcast %38 : vector<4x8x1xf32> to vector<4x8x2xf32>
    %41 = arith.mulf %40, %39 : vector<4x8x2xf32>
    %cst_14 = arith.constant dense<0.000000e+00> : vector<4x2xf32>
    %42 = vector.multi_reduction <add>, %41, %cst_14 [1] : vector<4x8x2xf32> to vector<4x2xf32>
    %c0_15 = arith.constant 0 : index
    %c0_16 = arith.constant 0 : index
    %43 = vector.load %arg6[%c0_15, %c0_16] : memref<1x2xf32, #tpu.memory_space<vmem>>, vector<1x2xf32>
    %44 = vector.broadcast %43 : vector<1x2xf32> to vector<4x2xf32>
    %45 = arith.addf %42, %44 : vector<4x2xf32>
    %c0_17 = arith.constant 0 : index
    %c0_18 = arith.constant 0 : index
    %c0_19 = arith.constant 0 : index
    %46 = vector.load %arg7[%c0_17, %c0_18, %c0_19] : memref<1x4x2xf32, #tpu.memory_space<vmem>>, vector<1x4x2xf32>
    %47 = vector.shape_cast %46 : vector<1x4x2xf32> to vector<4x2xf32>
    %48 = vector.shape_cast %45 : vector<4x2xf32> to vector<1x4x2xf32>
    tpu.vector_store %arg7[%c0_17, %c0_18, %c0_19], %48 {strides = array<i32>} : memref<1x4x2xf32, #tpu.memory_space<vmem>>, vector<1x4x2xf32>,
    return
  }
  func.func @transform_0(%arg0: i32) -> (i32, i32) {
    %c0_i32 = arith.constant 0 : i32
    %c0_i32_0 = arith.constant 0 : i32
    return %arg0, %c0_i32 : i32, i32
  }
  func.func @transform_1(%arg0: i32) -> (i32, i32) {
    %c0_i32 = arith.constant 0 : i32
    %c0_i32_0 = arith.constant 0 : i32
    %c0_i32_1 = arith.constant 0 : i32
    return %c0_i32, %c0_i32_0 : i32, i32
  }
  func.func @transform_2(%arg0: i32) -> (i32, i32) {
    %c0_i32 = arith.constant 0 : i32
    %c0_i32_0 = arith.constant 0 : i32
    %c0_i32_1 = arith.constant 0 : i32
    return %c0_i32, %c0_i32_0 : i32, i32
  }
  func.func @transform_3(%arg0: i32) -> (i32, i32) {
    %c0_i32 = arith.constant 0 : i32
    %c0_i32_0 = arith.constant 0 : i32
    %c0_i32_1 = arith.constant 0 : i32
    return %c0_i32, %c0_i32_0 : i32, i32
  }
  func.func @transform_4(%arg0: i32) -> (i32, i32) {
    %c0_i32 = arith.constant 0 : i32
    %c0_i32_0 = arith.constant 0 : i32
    %c0_i32_1 = arith.constant 0 : i32
    return %c0_i32, %c0_i32_0 : i32, i32
  }
  func.func @transform_5(%arg0: i32) -> (i32, i32) {
    %c0_i32 = arith.constant 0 : i32
    %c0_i32_0 = arith.constant 0 : i32
    %c0_i32_1 = arith.constant 0 : i32
    return %c0_i32, %c0_i32_0 : i32, i32
  }
  func.func @transform_6(%arg0: i32) -> (i32, i32, i32) {
    %c0_i32 = arith.constant 0 : i32
    %c0_i32_0 = arith.constant 0 : i32
    %c0_i32_1 = arith.constant 0 : i32
    return %arg0, %c0_i32, %c0_i32_0 : i32, i32, i32
  }
}

</mosaic_0001>

<llo_original>
// kernel: tpu_custom_call.1
$region0: #{tpu_custom_call.1}
  #allocation0 [shape = 'u32[]', space=smem, size = 0x4, offset = 0x4, fixed_abs, tag = 'smem constant byte address 0x4 - core index']
  #allocation1 [shape = 'u32[144,128]{1,0:T(1,128)}', space=vmem, size = 0x12000, scoped, tag = 'internal scratch']
  #allocation2 [shape = 'f32[1,1]{1,0:T(1,128)S(1)}', space=vmem, size = 0x200, scoped, tag = 'scoped memory for tpu_custom_call.1']
  %s0 = inlined_call_operand.vmem [shape: f32[32,1000], index: 0, kind: input, shape index: {}]
  %s1 = inlined_call_operand.vmem [shape: f32[1000,66], index: 1, kind: input, shape index: {}]
  %s2 = inlined_call_operand.vmem [shape: f32[1,66], index: 2, kind: input, shape index: {}]
  %s3 = inlined_call_operand.vmem [shape: f32[1,32], index: 3, kind: input, shape index: {}]
  %s4 = inlined_call_operand.<no memory space> [shape: f32[1,1], index: 4, kind: input, shape index: {}]
  %s5 = inlined_call_operand.vmem [shape: f32[1,2], index: 5, kind: input, shape index: {}]
  %s6 = inlined_call_operand.vmem [shape: f32[1,4,2], index: 6, kind: output, shape index: {}]
  %s7 = sld [smem:[#allocation0]]
  $region34: #{tpu_custom_call.1} parent=0
    _
  %s9 = ssub.s32 1, %s7
  %s10 = scalar_select 0, %s9, %s7
  %v11 = vstv %s4
  %12 = vst [vmem:[#allocation2] sm:$0x1] %v11
  // Predicated region
  $region2: #{tpu_custom_call.1} parent=0 // pred_check
    _
  $region3: #{tpu_custom_call.1} parent=0 // pred_check_branch
    %14 = sbr.rel (0) target = $region5
  $region4: #{tpu_custom_call.1} parent=0 // pred_region
    _
  $region5: #{tpu_custom_call.1} parent=0 // pred_fallthru
    _
  // Predicated region
  $region6: #{tpu_custom_call.1} parent=0 // pred_check
    _
  $region7: #{tpu_custom_call.1} parent=0 // pred_check_branch
    %16 = sbr.rel (0) target = $region9
  $region8: #{tpu_custom_call.1} parent=0 // pred_region
    _
  $region9: #{tpu_custom_call.1} parent=0 // pred_fallthru
    _
  // Predicated region
  $region10: #{tpu_custom_call.1} parent=0 // pred_check
    _
  $region11: #{tpu_custom_call.1} parent=0 // pred_check_branch
    %18 = sbr.rel (0) target = $region13
  $region12: #{tpu_custom_call.1} parent=0 // pred_region
    _
  $region13: #{tpu_custom_call.1} parent=0 // pred_fallthru
    _
  // Predicated region
  $region14: #{tpu_custom_call.1} parent=0 // pred_check
    _
  $region15: #{tpu_custom_call.1} parent=0 // pred_check_branch
    %20 = sbr.rel (0) target = $region17
  $region16: #{tpu_custom_call.1} parent=0 // pred_region
    _
  $region17: #{tpu_custom_call.1} parent=0 // pred_fallthru
    _
  // Predicated region
  $region18: #{tpu_custom_call.1} parent=0 // pred_check
    _
  $region19: #{tpu_custom_call.1} parent=0 // pred_check_branch
    %22 = sbr.rel (0) target = $region21
  $region20: #{tpu_custom_call.1} parent=0 // pred_region
    _
  $region21: #{tpu_custom_call.1} parent=0 // pred_fallthru
    _
  // Predicated region
  $region22: #{tpu_custom_call.1} parent=0 // pred_check
    _
  $region23: #{tpu_custom_call.1} parent=0 // pred_check_branch
    %24 = sbr.rel (0) target = $region25
  $region24: #{tpu_custom_call.1} parent=0 // pred_region
    _
  $region25: #{tpu_custom_call.1} parent=0 // pred_fallthru
    _
  %v25 = vld [vmem:[%s0] sm:$0xff]
  %v26 = vld [vmem:[%s0 + $0x8] sm:$0xff]
  %v27 = vld [vmem:[%s0 + $0x10] sm:$0xff]
  %v28 = vld [vmem:[%s0 + $0x18] sm:$0xff]
  %v29 = vld [vmem:[%s0 + $0x20] sm:$0xff]
  %v30 = vld [vmem:[%s0 + $0x28] sm:$0xff]
  %v31 = vld [vmem:[%s0 + $0x30] sm:$0xff]
  %v32 = vld [vmem:[%s0 + $0x38] sm:$0xff]
  %v33 = vld [vmem:[%s0 + $0x40] sm:$0xff]
  %v34 = vld [vmem:[%s0 + $0x48] sm:$0xff]
  %v35 = vld [vmem:[%s0 + $0x50] sm:$0xff]
  %v36 = vld [vmem:[%s0 + $0x58] sm:$0xff]
  %v37 = vld [vmem:[%s0 + $0x60] sm:$0xff]
  %v38 = vld [vmem:[%s0 + $0x68] sm:$0xff]
  %v39 = vld [vmem:[%s0 + $0x70] sm:$0xff]
  %v40 = vld [vmem:[%s0 + $0x78] sm:$0xff]
  %v41 = vld [vmem:[%s0 + $0x80] sm:$0xff]
  %v42 = vld [vmem:[%s0 + $0x88] sm:$0xff]
  %v43 = vld [vmem:[%s0 + $0x90] sm:$0xff]
  %v44 = vld [vmem:[%s0 + $0x98] sm:$0xff]
  %v45 = vld [vmem:[%s0 + $0xa0] sm:$0xff]
  %v46 = vld [vmem:[%s0 + $0xa8] sm:$0xff]
  %v47 = vld [vmem:[%s0 + $0xb0] sm:$0xff]
  %v48 = vld [vmem:[%s0 + $0xb8] sm:$0xff]
  %v49 = vld [vmem:[%s0 + $0xc0] sm:$0xff]
  %v50 = vld [vmem:[%s0 + $0xc8] sm:$0xff]
  %v51 = vld [vmem:[%s0 + $0xd0] sm:$0xff]
  %v52 = vld [vmem:[%s0 + $0xd8] sm:$0xff]
  %v53 = vld [vmem:[%s0 + $0xe0] sm:$0xff]
  %v54 = vld [vmem:[%s0 + $0xe8] sm:$0xff]
  %v55 = vld [vmem:[%s0 + $0xf0] sm:$0xff]
  %v56 = vld [vmem:[%s0 + $0xf8] sm:$0xff]
  %v57 = vld [vmem:[%s1] sm:$0xff]
  %v58 = vld [vmem:[%s1 + $0x8] sm:$0xff]
  %v59 = vld [vmem:[%s1 + $0x10] sm:$0xff]
  %v60 = vld [vmem:[%s1 + $0x18] sm:$0xff]
  %v61 = vld [vmem:[%s1 + $0x20] sm:$0xff]
  %v62 = vld [vmem:[%s1 + $0x28] sm:$0xff]
  %v63 = vld [vmem:[%s1 + $0x30] sm:$0xff]
  %v64 = vld [vmem:[%s1 + $0x38] sm:$0xff]
  %v65 = vld [vmem:[%s1 + $0x40] sm:$0xff]
  %v66 = vld [vmem:[%s1 + $0x48] sm:$0xff]
  %v67 = vld [vmem:[%s1 + $0x50] sm:$0xff]
  %v68 = vld [vmem:[%s1 + $0x58] sm:$0xff]
  %v69 = vld [vmem:[%s1 + $0x60] sm:$0xff]
  %v70 = vld [vmem:[%s1 + $0x68] sm:$0xff]
  %v71 = vld [vmem:[%s1 + $0x70] sm:$0xff]
  %v72 = vld [vmem:[%s1 + $0x78] sm:$0xff]
  %v73 = vld [vmem:[%s1 + $0x80] sm:$0xff]
  %v74 = vld [vmem:[%s1 + $0x88] sm:$0xff]
  %v75 = vld [vmem:[%s1 + $0x90] sm:$0xff]
  %v76 = vld [vmem:[%s1 + $0x98] sm:$0xff]
  %v77 = vld [vmem:[%s1 + $0xa0] sm:$0xff]
  %v78 = vld [vmem:[%s1 + $0xa8] sm:$0xff]
  %v79 = vld [vmem:[%s1 + $0xb0] sm:$0xff]
  %v80 = vld [vmem:[%s1 + $0xb8] sm:$0xff]
  %v81 = vld [vmem:[%s1 + $0xc0] sm:$0xff]
  %v82 = vld [vmem:[%s1 + $0xc8] sm:$0xff]
  %v83 = vld [vmem:[%s1 + $0xd0] sm:$0xff]
  %v84 = vld [vmem:[%s1 + $0xd8] sm:$0xff]
  %v85 = vld [vmem:[%s1 + $0xe0] sm:$0xff]
  %v86 = vld [vmem:[%s1 + $0xe8] sm:$0xff]
  %v87 = vld [vmem:[%s1 + $0xf0] sm:$0xff]
  %v88 = vld [vmem:[%s1 + $0xf8] sm:$0xff]
  %v89 = vld [vmem:[%s1 + $0x100] sm:$0xff]
  %v90 = vld [vmem:[%s1 + $0x108] sm:$0xff]
  %v91 = vld [vmem:[%s1 + $0x110] sm:$0xff]
  %v92 = vld [vmem:[%s1 + $0x118] sm:$0xff]
  %v93 = vld [vmem:[%s1 + $0x120] sm:$0xff]
  %v94 = vld [vmem:[%s1 + $0x128] sm:$0xff]
  %v95 = vld [vmem:[%s1 + $0x130] sm:$0xff]
  %v96 = vld [vmem:[%s1 + $0x138] sm:$0xff]
  %v97 = vld [vmem:[%s1 + $0x140] sm:$0xff]
  %v98 = vld [vmem:[%s1 + $0x148] sm:$0xff]
  %v99 = vld [vmem:[%s1 + $0x150] sm:$0xff]
  %v100 = vld [vmem:[%s1 + $0x158] sm:$0xff]
  %v101 = vld [vmem:[%s1 + $0x160] sm:$0xff]
  %v102 = vld [vmem:[%s1 + $0x168] sm:$0xff]
  %v103 = vld [vmem:[%s1 + $0x170] sm:$0xff]
  %v104 = vld [vmem:[%s1 + $0x178] sm:$0xff]
  %v105 = vld [vmem:[%s1 + $0x180] sm:$0xff]
  %v106 = vld [vmem:[%s1 + $0x188] sm:$0xff]
  %v107 = vld [vmem:[%s1 + $0x190] sm:$0xff]
  %v108 = vld [vmem:[%s1 + $0x198] sm:$0xff]
  %v109 = vld [vmem:[%s1 + $0x1a0] sm:$0xff]
  %v110 = vld [vmem:[%s1 + $0x1a8] sm:$0xff]
  %v111 = vld [vmem:[%s1 + $0x1b0] sm:$0xff]
  %v112 = vld [vmem:[%s1 + $0x1b8] sm:$0xff]
  %v113 = vld [vmem:[%s1 + $0x1c0] sm:$0xff]
  %v114 = vld [vmem:[%s1 + $0x1c8] sm:$0xff]
  %v115 = vld [vmem:[%s1 + $0x1d0] sm:$0xff]
  %v116 = vld [vmem:[%s1 + $0x1d8] sm:$0xff]
  %v117 = vld [vmem:[%s1 + $0x1e0] sm:$0xff]
  %v118 = vld [vmem:[%s1 + $0x1e8] sm:$0xff]
  %v119 = vld [vmem:[%s1 + $0x1f0] sm:$0xff]
  %v120 = vld [vmem:[%s1 + $0x1f8] sm:$0xff]
  %v121 = vld [vmem:[%s1 + $0x200] sm:$0xff]
  %v122 = vld [vmem:[%s1 + $0x208] sm:$0xff]
  %v123 = vld [vmem:[%s1 + $0x210] sm:$0xff]
  %v124 = vld [vmem:[%s1 + $0x218] sm:$0xff]
  %v125 = vld [vmem:[%s1 + $0x220] sm:$0xff]
  %v126 = vld [vmem:[%s1 + $0x228] sm:$0xff]
  %v127 = vld [vmem:[%s1 + $0x230] sm:$0xff]
  %v128 = vld [vmem:[%s1 + $0x238] sm:$0xff]
  %v129 = vld [vmem:[%s1 + $0x240] sm:$0xff]
  %v130 = vld [vmem:[%s1 + $0x248] sm:$0xff]
  %v131 = vld [vmem:[%s1 + $0x250] sm:$0xff]
  %v132 = vld [vmem:[%s1 + $0x258] sm:$0xff]
  %v133 = vld [vmem:[%s1 + $0x260] sm:$0xff]
  %v134 = vld [vmem:[%s1 + $0x268] sm:$0xff]
  %v135 = vld [vmem:[%s1 + $0x270] sm:$0xff]
  %v136 = vld [vmem:[%s1 + $0x278] sm:$0xff]
  %v137 = vld [vmem:[%s1 + $0x280] sm:$0xff]
  %v138 = vld [vmem:[%s1 + $0x288] sm:$0xff]
  %v139 = vld [vmem:[%s1 + $0x290] sm:$0xff]
  %v140 = vld [vmem:[%s1 + $0x298] sm:$0xff]
  %v141 = vld [vmem:[%s1 + $0x2a0] sm:$0xff]
  %v142 = vld [vmem:[%s1 + $0x2a8] sm:$0xff]
  %v143 = vld [vmem:[%s1 + $0x2b0] sm:$0xff]
  %v144 = vld [vmem:[%s1 + $0x2b8] sm:$0xff]
  %v145 = vld [vmem:[%s1 + $0x2c0] sm:$0xff]
  %v146 = vld [vmem:[%s1 + $0x2c8] sm:$0xff]
  %v147 = vld [vmem:[%s1 + $0x2d0] sm:$0xff]
  %v148 = vld [vmem:[%s1 + $0x2d8] sm:$0xff]
  %v149 = vld [vmem:[%s1 + $0x2e0] sm:$0xff]
  %v150 = vld [vmem:[%s1 + $0x2e8] sm:$0xff]
  %v151 = vld [vmem:[%s1 + $0x2f0] sm:$0xff]
  %v152 = vld [vmem:[%s1 + $0x2f8] sm:$0xff]
  %v153 = vld [vmem:[%s1 + $0x300] sm:$0xff]
  %v154 = vld [vmem:[%s1 + $0x308] sm:$0xff]
  %v155 = vld [vmem:[%s1 + $0x310] sm:$0xff]
  %v156 = vld [vmem:[%s1 + $0x318] sm:$0xff]
  %v157 = vld [vmem:[%s1 + $0x320] sm:$0xff]
  %v158 = vld [vmem:[%s1 + $0x328] sm:$0xff]
  %v159 = vld [vmem:[%s1 + $0x330] sm:$0xff]
  %v160 = vld [vmem:[%s1 + $0x338] sm:$0xff]
  %v161 = vld [vmem:[%s1 + $0x340] sm:$0xff]
  %v162 = vld [vmem:[%s1 + $0x348] sm:$0xff]
  %v163 = vld [vmem:[%s1 + $0x350] sm:$0xff]
  %v164 = vld [vmem:[%s1 + $0x358] sm:$0xff]
  %v165 = vld [vmem:[%s1 + $0x360] sm:$0xff]
  %v166 = vld [vmem:[%s1 + $0x368] sm:$0xff]
  %v167 = vld [vmem:[%s1 + $0x370] sm:$0xff]
  %v168 = vld [vmem:[%s1 + $0x378] sm:$0xff]
  %v169 = vld [vmem:[%s1 + $0x380] sm:$0xff]
  %v170 = vld [vmem:[%s1 + $0x388] sm:$0xff]
  %v171 = vld [vmem:[%s1 + $0x390] sm:$0xff]
  %v172 = vld [vmem:[%s1 + $0x398] sm:$0xff]
  %v173 = vld [vmem:[%s1 + $0x3a0] sm:$0xff]
  %v174 = vld [vmem:[%s1 + $0x3a8] sm:$0xff]
  %v175 = vld [vmem:[%s1 + $0x3b0] sm:$0xff]
  %v176 = vld [vmem:[%s1 + $0x3b8] sm:$0xff]
  %v177 = vld [vmem:[%s1 + $0x3c0] sm:$0xff]
  %v178 = vld [vmem:[%s1 + $0x3c8] sm:$0xff]
  %v179 = vld [vmem:[%s1 + $0x3d0] sm:$0xff]
  %v180 = vld [vmem:[%s1 + $0x3d8] sm:$0xff]
  %v181 = vld [vmem:[%s1 + $0x3e0] sm:$0xff]
  %v182 = vld [vmem:[%s2] sm:$0x1]
  %v184 = vlaneseq
  %v185 = vshrl.u32 %v184, 7
  %v186 = vsub.s32 0, %v185
  %v187 = vrot.slane %v182, %v186
  %vm189 = vcmask 850944
  %v191 = vsel %vm189, %v32, 0
  %v194 = vsel %vm189, %v40, 0
  %v197 = vsel %vm189, %v48, 0
  %v200 = vsel %vm189, %v56, 0
  %202 = vmatprep.subr.mxu0 0.0
  %203 = vmatpush1.msra.mxu0 %v72
  %204 = vmatprep.subr.mxu0 0.0
  %205 = vmatpush1.msra.mxu0 %v71
  %206 = vmatprep.subr.mxu0 0.0
  %207 = vmatpush1.msra.mxu0 %v70
  %208 = vmatprep.subr.mxu0 0.0
  %209 = vmatpush1.msra.mxu0 %v69
  %210 = vmatprep.subr.mxu0 0.0
  %211 = vmatpush1.msra.mxu0 %v68
  %212 = vmatprep.subr.mxu0 0.0
  %213 = vmatpush1.msra.mxu0 %v67
  %214 = vmatprep.subr.mxu0 0.0
  %215 = vmatpush1.msra.mxu0 %v66
  %216 = vmatprep.subr.mxu0 0.0
  %217 = vmatpush1.msra.mxu0 %v65
  %218 = vmatprep.subr.mxu0 0.0
  %219 = vmatpush1.msra.mxu0 %v64
  %220 = vmatprep.subr.mxu0 0.0
  %221 = vmatpush1.msra.mxu0 %v63
  %222 = vmatprep.subr.mxu0 0.0
  %223 = vmatpush1.msra.mxu0 %v62
  %224 = vmatprep.subr.mxu0 0.0
  %225 = vmatpush1.msra.mxu0 %v61
  %226 = vmatprep.subr.mxu0 0.0
  %227 = vmatpush1.msra.mxu0 %v60
  %228 = vmatprep.subr.mxu0 0.0
  %229 = vmatpush1.msra.mxu0 %v59
  %230 = vmatprep.subr.mxu0 0.0
  %231 = vmatpush1.msra.mxu0 %v58
  %232 = vmatprep.subr.mxu0 0.0
  %233 = vmatpush1.msra.mxu0 %v57
  %234 = vmatprep.subr.mxu0 0.0
  %235 = vmatpush2.msra.mxu0 %v88
  %236 = vmatprep.subr.mxu0 0.0
  %237 = vmatpush2.msra.mxu0 %v87
  %238 = vmatprep.subr.mxu0 0.0
  %239 = vmatpush2.msra.mxu0 %v86
  %240 = vmatprep.subr.mxu0 0.0
  %241 = vmatpush2.msra.mxu0 %v85
  %242 = vmatprep.subr.mxu0 0.0
  %243 = vmatpush2.msra.mxu0 %v84
  %244 = vmatprep.subr.mxu0 0.0
  %245 = vmatpush2.msra.mxu0 %v83
  %246 = vmatprep.subr.mxu0 0.0
  %247 = vmatpush2.msra.mxu0 %v82
  %248 = vmatprep.subr.mxu0 0.0
  %249 = vmatpush2.msra.mxu0 %v81
  %250 = vmatprep.subr.mxu0 0.0
  %251 = vmatpush2.msra.mxu0 %v80
  %252 = vmatprep.subr.mxu0 0.0
  %253 = vmatpush2.msra.mxu0 %v79
  %254 = vmatprep.subr.mxu0 0.0
  %255 = vmatpush2.msra.mxu0 %v78
  %256 = vmatprep.subr.mxu0 0.0
  %257 = vmatpush2.msra.mxu0 %v77
  %258 = vmatprep.subr.mxu0 0.0
  %259 = vmatpush2.msra.mxu0 %v76
  %260 = vmatprep.subr.mxu0 0.0
  %261 = vmatpush2.msra.mxu0 %v75
  %262 = vmatprep.subr.mxu0 0.0
  %263 = vmatpush2.msra.mxu0 %v74
  %264 = vmatprep.subr.mxu0 0.0
  %265 = vmatpush2.msra.mxu0 %v73
  %266 = vmatprep.mubr.f32.mxu0 %v26
  %267 = vmatmul.mubr.f32.gmra.mxu0 %v25
  %v268 = vpop.f32.mrf.mxu0
  %v269 = vadd.f32 %v187, %v268
  %v270 = vpop.f32.mrf.mxu0
  %271 = vmatprep.mubr.f32.mxu0 %v34
  %272 = vmatmul.mubr.f32.gmra.mxu0 %v33
  %v273 = vpop.f32.mrf.mxu0
  %v274 = vadd.f32 %v187, %v273
  %v275 = vpop.f32.mrf.mxu0
  %276 = vmatprep.mubr.f32.mxu0 %v42
  %277 = vmatmul.mubr.f32.gmra.mxu0 %v41
  %v278 = vpop.f32.mrf.mxu0
  %v279 = vadd.f32 %v187, %v278
  %v280 = vpop.f32.mrf.mxu0
  %281 = vmatprep.mubr.f32.mxu0 %v50
  %282 = vmatmul.mubr.f32.gmra.mxu0 %v49
  %v283 = vpop.f32.mrf.mxu0
  %v284 = vadd.f32 %v187, %v283
  %v285 = vpop.f32.mrf.mxu0
  %286 = vdwg.mxu0
  %287 = vmatprep.subr.mxu0 0.0
  %288 = vmatpush1.msra.mxu0 %v104
  %289 = vmatprep.subr.mxu0 0.0
  %290 = vmatpush1.msra.mxu0 %v103
  %291 = vmatprep.subr.mxu0 0.0
  %292 = vmatpush1.msra.mxu0 %v102
  %293 = vmatprep.subr.mxu0 0.0
  %294 = vmatpush1.msra.mxu0 %v101
  %295 = vmatprep.subr.mxu0 0.0
  %296 = vmatpush1.msra.mxu0 %v100
  %297 = vmatprep.subr.mxu0 0.0
  %298 = vmatpush1.msra.mxu0 %v99
  %299 = vmatprep.subr.mxu0 0.0
  %300 = vmatpush1.msra.mxu0 %v98
  %301 = vmatprep.subr.mxu0 0.0
  %302 = vmatpush1.msra.mxu0 %v97
  %303 = vmatprep.subr.mxu0 0.0
  %304 = vmatpush1.msra.mxu0 %v96
  %305 = vmatprep.subr.mxu0 0.0
  %306 = vmatpush1.msra.mxu0 %v95
  %307 = vmatprep.subr.mxu0 0.0
  %308 = vmatpush1.msra.mxu0 %v94
  %309 = vmatprep.subr.mxu0 0.0
  %310 = vmatpush1.msra.mxu0 %v93
  %311 = vmatprep.subr.mxu0 0.0
  %312 = vmatpush1.msra.mxu0 %v92
  %313 = vmatprep.subr.mxu0 0.0
  %314 = vmatpush1.msra.mxu0 %v91
  %315 = vmatprep.subr.mxu0 0.0
  %316 = vmatpush1.msra.mxu0 %v90
  %317 = vmatprep.subr.mxu0 0.0
  %318 = vmatpush1.msra.mxu0 %v89
  %319 = vmatprep.subr.mxu0 0.0
  %320 = vmatpush2.msra.mxu0 %v120
  %321 = vmatprep.subr.mxu0 0.0
  %322 = vmatpush2.msra.mxu0 %v119
  %323 = vmatprep.subr.mxu0 0.0
  %324 = vmatpush2.msra.mxu0 %v118
  %325 = vmatprep.subr.mxu0 0.0
  %326 = vmatpush2.msra.mxu0 %v117
  %327 = vmatprep.subr.mxu0 0.0
  %328 = vmatpush2.msra.mxu0 %v116
  %329 = vmatprep.subr.mxu0 0.0
  %330 = vmatpush2.msra.mxu0 %v115
  %331 = vmatprep.subr.mxu0 0.0
  %332 = vmatpush2.msra.mxu0 %v114
  %333 = vmatprep.subr.mxu0 0.0
  %334 = vmatpush2.msra.mxu0 %v113
  %335 = vmatprep.subr.mxu0 0.0
  %336 = vmatpush2.msra.mxu0 %v112
  %337 = vmatprep.subr.mxu0 0.0
  %338 = vmatpush2.msra.mxu0 %v111
  %339 = vmatprep.subr.mxu0 0.0
  %340 = vmatpush2.msra.mxu0 %v110
  %341 = vmatprep.subr.mxu0 0.0
  %342 = vmatpush2.msra.mxu0 %v109
  %343 = vmatprep.subr.mxu0 0.0
  %344 = vmatpush2.msra.mxu0 %v108
  %345 = vmatprep.subr.mxu0 0.0
  %346 = vmatpush2.msra.mxu0 %v107
  %347 = vmatprep.subr.mxu0 0.0
  %348 = vmatpush2.msra.mxu0 %v106
  %349 = vmatprep.subr.mxu0 0.0
  %350 = vmatpush2.msra.mxu0 %v105
  %351 = vmatprep.mubr.f32.mxu0 %v28
  %352 = vmatmul.mubr.f32.gmra.mxu0 %v27
  %v353 = vpop.f32.mrf.mxu0
  %v354 = vadd.f32 %v269, %v353
  %v355 = vpop.f32.mrf.mxu0
  %356 = vmatprep.mubr.f32.mxu0 %v36
  %357 = vmatmul.mubr.f32.gmra.mxu0 %v35
  %v358 = vpop.f32.mrf.mxu0
  %v359 = vadd.f32 %v274, %v358
  %v360 = vpop.f32.mrf.mxu0
  %361 = vmatprep.mubr.f32.mxu0 %v44
  %362 = vmatmul.mubr.f32.gmra.mxu0 %v43
  %v363 = vpop.f32.mrf.mxu0
  %v364 = vadd.f32 %v279, %v363
  %v365 = vpop.f32.mrf.mxu0
  %366 = vmatprep.mubr.f32.mxu0 %v52
  %367 = vmatmul.mubr.f32.gmra.mxu0 %v51
  %v368 = vpop.f32.mrf.mxu0
  %v369 = vadd.f32 %v284, %v368
  %v370 = vpop.f32.mrf.mxu0
  %371 = vdwg.mxu0
  %372 = vmatprep.subr.mxu0 0.0
  %373 = vmatpush1.msra.mxu0 %v136
  %374 = vmatprep.subr.mxu0 0.0
  %375 = vmatpush1.msra.mxu0 %v135
  %376 = vmatprep.subr.mxu0 0.0
  %377 = vmatpush1.msra.mxu0 %v134
  %378 = vmatprep.subr.mxu0 0.0
  %379 = vmatpush1.msra.mxu0 %v133
  %380 = vmatprep.subr.mxu0 0.0
  %381 = vmatpush1.msra.mxu0 %v132
  %382 = vmatprep.subr.mxu0 0.0
  %383 = vmatpush1.msra.mxu0 %v131
  %384 = vmatprep.subr.mxu0 0.0
  %385 = vmatpush1.msra.mxu0 %v130
  %386 = vmatprep.subr.mxu0 0.0
  %387 = vmatpush1.msra.mxu0 %v129
  %388 = vmatprep.subr.mxu0 0.0
  %389 = vmatpush1.msra.mxu0 %v128
  %390 = vmatprep.subr.mxu0 0.0
  %391 = vmatpush1.msra.mxu0 %v127
  %392 = vmatprep.subr.mxu0 0.0
  %393 = vmatpush1.msra.mxu0 %v126
  %394 = vmatprep.subr.mxu0 0.0
  %395 = vmatpush1.msra.mxu0 %v125
  %396 = vmatprep.subr.mxu0 0.0
  %397 = vmatpush1.msra.mxu0 %v124
  %398 = vmatprep.subr.mxu0 0.0
  %399 = vmatpush1.msra.mxu0 %v123
  %400 = vmatprep.subr.mxu0 0.0
  %401 = vmatpush1.msra.mxu0 %v122
  %402 = vmatprep.subr.mxu0 0.0
  %403 = vmatpush1.msra.mxu0 %v121
  %404 = vmatprep.subr.mxu0 0.0
  %405 = vmatpush2.msra.mxu0 %v152
  %406 = vmatprep.subr.mxu0 0.0
  %407 = vmatpush2.msra.mxu0 %v151
  %408 = vmatprep.subr.mxu0 0.0
  %409 = vmatpush2.msra.mxu0 %v150
  %410 = vmatprep.subr.mxu0 0.0
  %411 = vmatpush2.msra.mxu0 %v149
  %412 = vmatprep.subr.mxu0 0.0
  %413 = vmatpush2.msra.mxu0 %v148
  %414 = vmatprep.subr.mxu0 0.0
  %415 = vmatpush2.msra.mxu0 %v147
  %416 = vmatprep.subr.mxu0 0.0
  %417 = vmatpush2.msra.mxu0 %v146
  %418 = vmatprep.subr.mxu0 0.0
  %419 = vmatpush2.msra.mxu0 %v145
  %420 = vmatprep.subr.mxu0 0.0
  %421 = vmatpush2.msra.mxu0 %v144
  %422 = vmatprep.subr.mxu0 0.0
  %423 = vmatpush2.msra.mxu0 %v143
  %424 = vmatprep.subr.mxu0 0.0
  %425 = vmatpush2.msra.mxu0 %v142
  %426 = vmatprep.subr.mxu0 0.0
  %427 = vmatpush2.msra.mxu0 %v141
  %428 = vmatprep.subr.mxu0 0.0
  %429 = vmatpush2.msra.mxu0 %v140
  %430 = vmatprep.subr.mxu0 0.0
  %431 = vmatpush2.msra.mxu0 %v139
  %432 = vmatprep.subr.mxu0 0.0
  %433 = vmatpush2.msra.mxu0 %v138
  %434 = vmatprep.subr.mxu0 0.0
  %435 = vmatpush2.msra.mxu0 %v137
  %436 = vmatprep.mubr.f32.mxu0 %v30
  %437 = vmatmul.mubr.f32.gmra.mxu0 %v29
  %v438 = vpop.f32.mrf.mxu0
  %v439 = vadd.f32 %v354, %v438
  %v440 = vpop.f32.mrf.mxu0
  %441 = vmatprep.mubr.f32.mxu0 %v38
  %442 = vmatmul.mubr.f32.gmra.mxu0 %v37
  %v443 = vpop.f32.mrf.mxu0
  %v444 = vadd.f32 %v359, %v443
  %v445 = vpop.f32.mrf.mxu0
  %446 = vmatprep.mubr.f32.mxu0 %v46
  %447 = vmatmul.mubr.f32.gmra.mxu0 %v45
  %v448 = vpop.f32.mrf.mxu0
  %v449 = vadd.f32 %v364, %v448
  %v450 = vpop.f32.mrf.mxu0
  %451 = vmatprep.mubr.f32.mxu0 %v54
  %452 = vmatmul.mubr.f32.gmra.mxu0 %v53
  %v453 = vpop.f32.mrf.mxu0
  %v454 = vadd.f32 %v369, %v453
  %v455 = vpop.f32.mrf.mxu0
  %456 = vdwg.mxu0
  %457 = vmatprep.subr.mxu0 0.0
  %458 = vmatpush1.msra.mxu0 %v168
  %459 = vmatprep.subr.mxu0 0.0
  %460 = vmatpush1.msra.mxu0 %v167
  %461 = vmatprep.subr.mxu0 0.0
  %462 = vmatpush1.msra.mxu0 %v166
  %463 = vmatprep.subr.mxu0 0.0
  %464 = vmatpush1.msra.mxu0 %v165
  %465 = vmatprep.subr.mxu0 0.0
  %466 = vmatpush1.msra.mxu0 %v164
  %467 = vmatprep.subr.mxu0 0.0
  %468 = vmatpush1.msra.mxu0 %v163
  %469 = vmatprep.subr.mxu0 0.0
  %470 = vmatpush1.msra.mxu0 %v162
  %471 = vmatprep.subr.mxu0 0.0
  %472 = vmatpush1.msra.mxu0 %v161
  %473 = vmatprep.subr.mxu0 0.0
  %474 = vmatpush1.msra.mxu0 %v160
  %475 = vmatprep.subr.mxu0 0.0
  %476 = vmatpush1.msra.mxu0 %v159
  %477 = vmatprep.subr.mxu0 0.0
  %478 = vmatpush1.msra.mxu0 %v158
  %479 = vmatprep.subr.mxu0 0.0
  %480 = vmatpush1.msra.mxu0 %v157
  %481 = vmatprep.subr.mxu0 0.0
  %482 = vmatpush1.msra.mxu0 %v156
  %483 = vmatprep.subr.mxu0 0.0
  %484 = vmatpush1.msra.mxu0 %v155
  %485 = vmatprep.subr.mxu0 0.0
  %486 = vmatpush1.msra.mxu0 %v154
  %487 = vmatprep.subr.mxu0 0.0
  %488 = vmatpush1.msra.mxu0 %v153
  %489 = vmatprep.subr.mxu0 0.0
  %490 = vmatpush2.msra.mxu0 0.0
  %491 = vmatprep.subr.mxu0 0.0
  %492 = vmatpush2.msra.mxu0 0.0
  %493 = vmatprep.subr.mxu0 0.0
  %494 = vmatpush2.msra.mxu0 0.0
  %495 = vmatprep.subr.mxu0 0.0
  %496 = vmatpush2.msra.mxu0 %v181
  %497 = vmatprep.subr.mxu0 0.0
  %498 = vmatpush2.msra.mxu0 %v180
  %499 = vmatprep.subr.mxu0 0.0
  %500 = vmatpush2.msra.mxu0 %v179
  %501 = vmatprep.subr.mxu0 0.0
  %502 = vmatpush2.msra.mxu0 %v178
  %503 = vmatprep.subr.mxu0 0.0
  %504 = vmatpush2.msra.mxu0 %v177
  %505 = vmatprep.subr.mxu0 0.0
  %506 = vmatpush2.msra.mxu0 %v176
  %507 = vmatprep.subr.mxu0 0.0
  %508 = vmatpush2.msra.mxu0 %v175
  %509 = vmatprep.subr.mxu0 0.0
  %510 = vmatpush2.msra.mxu0 %v174
  %511 = vmatprep.subr.mxu0 0.0
  %512 = vmatpush2.msra.mxu0 %v173
  %513 = vmatprep.subr.mxu0 0.0
  %514 = vmatpush2.msra.mxu0 %v172
  %515 = vmatprep.subr.mxu0 0.0
  %516 = vmatpush2.msra.mxu0 %v171
  %517 = vmatprep.subr.mxu0 0.0
  %518 = vmatpush2.msra.mxu0 %v170
  %519 = vmatprep.subr.mxu0 0.0
  %520 = vmatpush2.msra.mxu0 %v169
  %521 = vmatprep.mubr.f32.mxu0 %v191
  %522 = vmatmul.mubr.f32.gmra.mxu0 %v31
  %v523 = vpop.f32.mrf.mxu0
  %v524 = vadd.f32 %v439, %v523
  %v525 = vpop.f32.mrf.mxu0
  %526 = vmatprep.mubr.f32.mxu0 %v194
  %527 = vmatmul.mubr.f32.gmra.mxu0 %v39
  %v528 = vpop.f32.mrf.mxu0
  %v529 = vadd.f32 %v444, %v528
  %v530 = vpop.f32.mrf.mxu0
  %531 = vmatprep.mubr.f32.mxu0 %v197
  %532 = vmatmul.mubr.f32.gmra.mxu0 %v47
  %v533 = vpop.f32.mrf.mxu0
  %v534 = vadd.f32 %v449, %v533
  %v535 = vpop.f32.mrf.mxu0
  %536 = vmatprep.mubr.f32.mxu0 %v200
  %537 = vmatmul.mubr.f32.gmra.mxu0 %v55
  %v538 = vpop.f32.mrf.mxu0
  %v539 = vadd.f32 %v454, %v538
  %v540 = vpop.f32.mrf.mxu0
  %541 = vdwg.mxu0
  %v542 = vtanh.pop %v524
  %v543 = vtanh.pop %v529
  %v544 = vtanh.pop %v534
  %v545 = vtanh.pop %v539
  %v546 = vxor.u32 %v524, 2147483648
  %v547 = vxor.u32 %v529, 2147483648
  %v548 = vxor.u32 %v534, 2147483648
  %v549 = vxor.u32 %v539, 2147483648
  %v550 = vmul.f32 %v546, 1.442695
  %v551 = vpow.pop %v550
  %v552 = vmul.f32 %v547, 1.442695
  %v553 = vpow.pop %v552
  %v554 = vmul.f32 %v548, 1.442695
  %v555 = vpow.pop %v554
  %v556 = vmul.f32 %v549, 1.442695
  %v557 = vpow.pop %v556
  %v558 = vadd.f32 %v551, 1.0
  %v559 = vadd.f32 %v553, 1.0
  %v560 = vadd.f32 %v555, 1.0
  %v561 = vadd.f32 %v557, 1.0
  %v562 = vrcp.pop %v558
  %v563 = vmul.f32 1.0, %v562
  %v564 = vrcp.pop %v559
  %v565 = vmul.f32 1.0, %v564
  %v566 = vrcp.pop %v560
  %v567 = vmul.f32 1.0, %v566
  %v568 = vrcp.pop %v561
  %v569 = vmul.f32 1.0, %v568
  %574 = vrot.lane.b32.xlu0 %v563, 96
  %v575 = vpop.permute.xlu0 %574
  %576 = vrot.lane.b32.xlu0 %v565, 96
  %v577 = vpop.permute.xlu0 %576
  %578 = vrot.lane.b32.xlu0 %v567, 96
  %v579 = vpop.permute.xlu0 %578
  %580 = vrot.lane.b32.xlu0 %v569, 96
  %v581 = vpop.permute.xlu0 %580
  %v586 = vmul.f32 %v542, %v575
  %v587 = vmul.f32 %v543, %v577
  %v588 = vmul.f32 %v544, %v579
  %v589 = vmul.f32 %v545, %v581
  %v590 = vld [vmem:[%s3] sm:$0x1]
  %v592 = vlaneseq
  %v593 = vshrl.u32 %v592, 7
  %v594 = vsub.s32 0, %v593
  %v595 = vrot.slane %v590, %v594
  %v597 = vmul.f32 %v586, %v595
  %v598 = vmul.f32 %v587, %v595
  %v599 = vmul.f32 %v588, %v595
  %v600 = vmul.f32 %v589, %v595
  %vm601 = vcmask 261120
  %v602 = vsel %vm601, %v597, 0.0
  %603 = vadd.xlane.f32.xlu0 %v602
  %v604 = vpop.xlane.xlu0 %603
  %v605 = vsel %vm601, %v598, 0.0
  %606 = vadd.xlane.f32.xlu0 %v605
  %v607 = vpop.xlane.xlu0 %606
  %v608 = vsel %vm601, %v599, 0.0
  %609 = vadd.xlane.f32.xlu0 %v608
  %v610 = vpop.xlane.xlu0 %609
  %v611 = vsel %vm601, %v600, 0.0
  %612 = vadd.xlane.f32.xlu0 %v611
  %v613 = vpop.xlane.xlu0 %612
  %v614 = vld [vmem:[#allocation2] sm:$0x1]
  %v616 = vlaneseq
  %v617 = vshrl.u32 %v616, 7
  %v618 = vsub.s32 0, %v617
  %v619 = vrot.slane %v614, %v618
  %v621 = vadd.f32 %v604, %v619
  %v622 = vadd.f32 %v607, %v619
  %v623 = vadd.f32 %v610, %v619
  %v624 = vadd.f32 %v613, %v619
  %vm625 = vcmask 7168
  %v626 = vsel %vm625, %v621, -inf
  %v627 = vrot.slane %v626, 4
  %v628 = vmax.f32 %v626, %v627
  %v629 = vrot.slane %v628, 2
  %v630 = vmax.f32 %v628, %v629
  %v631 = vrot.slane %v630, 1
  %v632 = vmax.f32 %v630, %v631
  %v633 = vsel %vm625, %v622, -inf
  %v634 = vrot.slane %v633, 4
  %v635 = vmax.f32 %v633, %v634
  %v636 = vrot.slane %v635, 2
  %v637 = vmax.f32 %v635, %v636
  %v638 = vrot.slane %v637, 1
  %v639 = vmax.f32 %v637, %v638
  %v640 = vsel %vm625, %v623, -inf
  %v641 = vrot.slane %v640, 4
  %v642 = vmax.f32 %v640, %v641
  %v643 = vrot.slane %v642, 2
  %v644 = vmax.f32 %v642, %v643
  %v645 = vrot.slane %v644, 1
  %v646 = vmax.f32 %v644, %v645
  %v647 = vsel %vm625, %v624, -inf
  %v648 = vrot.slane %v647, 4
  %v649 = vmax.f32 %v647, %v648
  %v650 = vrot.slane %v649, 2
  %v651 = vmax.f32 %v649, %v650
  %v652 = vrot.slane %v651, 1
  %v653 = vmax.f32 %v651, %v652
  %v654 = vsub.f32 %v621, %v632
  %v655 = vsub.f32 %v622, %v639
  %v656 = vsub.f32 %v623, %v646
  %v657 = vsub.f32 %v624, %v653
  %v658 = vmul.f32 %v654, 1.442695
  %v659 = vpow.pop %v658
  %v660 = vmul.f32 %v655, 1.442695
  %v661 = vpow.pop %v660
  %v662 = vmul.f32 %v656, 1.442695
  %v663 = vpow.pop %v662
  %v664 = vmul.f32 %v657, 1.442695
  %v665 = vpow.pop %v664
  %v666 = vsel %vm625, %v659, 0.0
  %v667 = vrot.slane %v666, 4
  %v668 = vadd.f32 %v666, %v667
  %v669 = vrot.slane %v668, 2
  %v670 = vadd.f32 %v668, %v669
  %v671 = vrot.slane %v670, 1
  %v672 = vadd.f32 %v670, %v671
  %v673 = vsel %vm625, %v661, 0.0
  %v674 = vrot.slane %v673, 4
  %v675 = vadd.f32 %v673, %v674
  %v676 = vrot.slane %v675, 2
  %v677 = vadd.f32 %v675, %v676
  %v678 = vrot.slane %v677, 1
  %v679 = vadd.f32 %v677, %v678
  %v680 = vsel %vm625, %v663, 0.0
  %v681 = vrot.slane %v680, 4
  %v682 = vadd.f32 %v680, %v681
  %v683 = vrot.slane %v682, 2
  %v684 = vadd.f32 %v682, %v683
  %v685 = vrot.slane %v684, 1
  %v686 = vadd.f32 %v684, %v685
  %v687 = vsel %vm625, %v665, 0.0
  %v688 = vrot.slane %v687, 4
  %v689 = vadd.f32 %v687, %v688
  %v690 = vrot.slane %v689, 2
  %v691 = vadd.f32 %v689, %v690
  %v692 = vrot.slane %v691, 1
  %v693 = vadd.f32 %v691, %v692
  %v694 = vrcp.pop %v672
  %v695 = vrcp.pop %v679
  %v696 = vrcp.pop %v686
  %v697 = vrcp.pop %v693
  %v698 = vmul.f32 %v672, %v694
  %v699 = vmul.f32 %v679, %v695
  %v700 = vmul.f32 %v686, %v696
  %v701 = vmul.f32 %v693, %v697
  %v702 = vsub.f32 2.0, %v698
  %v703 = vsub.f32 2.0, %v699
  %v704 = vsub.f32 2.0, %v700
  %v705 = vsub.f32 2.0, %v701
  %v706 = vmul.f32 %v694, %v702
  %v707 = vmul.f32 %v695, %v703
  %v708 = vmul.f32 %v696, %v704
  %v709 = vmul.f32 %v697, %v705
  %v710 = vmul.f32 %v659, %v706
  %v711 = vmul.f32 %v661, %v707
  %v712 = vmul.f32 %v663, %v708
  %v713 = vmul.f32 %v665, %v709
  %715 = vset.pattern.permute.xlu0 0
  %716 = vperm.xlu0 %715, %v710
  %v717 = vpop.permute.xlu0 %716
  %720 = vset.pattern.permute.xlu0 0
  %721 = vperm.xlu0 %720, %v711
  %v722 = vpop.permute.xlu0 %721
  %725 = vset.pattern.permute.xlu0 0
  %726 = vperm.xlu0 %725, %v712
  %v727 = vpop.permute.xlu0 %726
  %730 = vset.pattern.permute.xlu0 0
  %731 = vperm.xlu0 %730, %v713
  %v732 = vpop.permute.xlu0 %731
  %v734 = vmul.f32 %v717, %v524
  %v735 = vmul.f32 %v722, %v529
  %v736 = vmul.f32 %v727, %v534
  %v737 = vmul.f32 %v732, %v539
  %vm738 = vcmask 540160
  %v739 = vsel %vm738, %v734, 0.0
  %v740 = vrot.slane %v739, 4
  %v741 = vadd.f32 %v739, %v740
  %v742 = vrot.slane %v741, 2
  %v743 = vadd.f32 %v741, %v742
  %v744 = vrot.slane %v743, 1
  %v745 = vadd.f32 %v743, %v744
  %v746 = vsel %vm738, %v735, 0.0
  %v747 = vrot.slane %v746, 4
  %v748 = vadd.f32 %v746, %v747
  %v749 = vrot.slane %v748, 2
  %v750 = vadd.f32 %v748, %v749
  %v751 = vrot.slane %v750, 1
  %v752 = vadd.f32 %v750, %v751
  %v753 = vsel %vm738, %v736, 0.0
  %v754 = vrot.slane %v753, 4
  %v755 = vadd.f32 %v753, %v754
  %v756 = vrot.slane %v755, 2
  %v757 = vadd.f32 %v755, %v756
  %v758 = vrot.slane %v757, 1
  %v759 = vadd.f32 %v757, %v758
  %v760 = vsel %vm738, %v737, 0.0
  %v761 = vrot.slane %v760, 4
  %v762 = vadd.f32 %v760, %v761
  %v763 = vrot.slane %v762, 2
  %v764 = vadd.f32 %v762, %v763
  %v765 = vrot.slane %v764, 1
  %v766 = vadd.f32 %v764, %v765
  %v767 = vld [vmem:[%s5] sm:$0x1]
  %v769 = vlaneseq
  %v770 = vshrl.u32 %v769, 7
  %v771 = vsub.s32 0, %v770
  %v772 = vrot.slane %v767, %v771
  %773 = vrot.lane.b32.xlu0 %v772, 64
  %v774 = vpop.permute.xlu0 %773
  %v776 = vadd.f32 %v745, %v774
  %v777 = vadd.f32 %v752, %v774
  %v778 = vadd.f32 %v759, %v774
  %v779 = vadd.f32 %v766, %v774
  %v784 = vrot.slane %v777, 7
  %vm785 = vcmask 1041409
  %v786 = vsel %vm785, %v784, %v776
  %v787 = vrot.slane %v778, 6
  %vm788 = vcmask 1042434
  %v789 = vsel %vm788, %v787, %v786
  %v790 = vrot.slane %v779, 5
  %vm791 = vcmask 1043459
  %v792 = vsel %vm791, %v790, %v789
  %793 = vrot.lane.b32.xlu0 %v792, 64
  %v794 = vpop.permute.xlu0 %793
  %vm796 = vcmask 11264
  %797 = vst.msk [vmem:[%s6] sm:$0xf] %vm796, %v794
  // Predicated region
  $region26: #{tpu_custom_call.1} parent=0 // pred_check
    _
  $region27: #{tpu_custom_call.1} parent=0 // pred_check_branch
    %799 = sbr.rel (0) target = $region29
  $region28: #{tpu_custom_call.1} parent=0 // pred_region
    _
  $region29: #{tpu_custom_call.1} parent=0 // pred_fallthru
    _
  // Predicated region
  $region30: #{tpu_custom_call.1} parent=0 // pred_check
    _
  $region31: #{tpu_custom_call.1} parent=0 // pred_check_branch
    %801 = sbr.rel (0) target = $region33
  $region32: #{tpu_custom_call.1} parent=0 // pred_region
    _
  $region33: #{tpu_custom_call.1} parent=0 // pred_fallthru
    _

</llo_original>
